<compile_context>
chip_gen: v7x
topology: tpu7x:2x2x1
jax: 0.10.0
libtpu: 0.0.40
codegen_flags: <defaults>
</compile_context>

<pallas_src>
import functools

import jax
import jax.numpy as jnp
from jax import lax
from jax.experimental import pallas as pl
from jax.experimental.pallas import tpu as pltpu


def _round_up(x, m):
    return ((x + m - 1) // m) * m


def _pick_tile(dim, align, candidates):
    """Largest candidate tile (multiple of `align`) whose padded size equals
    the minimal `align`-padded size, so no FLOPs/HBM bytes are wasted on
    oversized padding."""
    min_pad = _round_up(dim, align)
    for t in candidates:  # descending
        if t % align == 0 and _round_up(dim, t) == min_pad:
            return t
    return align


# ---------------------------------------------------------------------------
# Kernels
# ---------------------------------------------------------------------------
_NT_DNUMS = (((1,), (1,)), ((), ()))  # contract last dim of both operands


def _linear_kernel_single_k(x_ref, w_ref, b_ref, o_ref):
    # x_ref: (tm, K), w_ref: (tn, K) [PyTorch layout], b_ref: (1, tn).
    # Whole K fits in one block: write the output directly, no scratch.
    acc = lax.dot_general(x_ref[...], w_ref[...],
                          dimension_numbers=_NT_DNUMS,
                          preferred_element_type=jnp.float32)
    o_ref[...] = (acc + b_ref[...]).astype(o_ref.dtype)


def _linear_kernel_multi_k(x_ref, w_ref, b_ref, o_ref, acc_ref):
    # Grid = (M blocks, N blocks, K blocks); K last = reduction axis.
    k = pl.program_id(2)

    @pl.when(k == 0)
    def _():
        acc_ref[...] = jnp.zeros_like(acc_ref)

    acc_ref[...] += lax.dot_general(x_ref[...], w_ref[...],
                                    dimension_numbers=_NT_DNUMS,
                                    preferred_element_type=jnp.float32)

    @pl.when(k == pl.num_programs(2) - 1)
    def _():
        # Bias added exactly once, on the final K step.
        o_ref[...] = (acc_ref[...] + b_ref[...]).astype(o_ref.dtype)


# ---------------------------------------------------------------------------
# Forward (jitted; tile selection is static given the shapes)
# ---------------------------------------------------------------------------
_M_TILES = (512, 256, 128, 64, 32, 16, 8)
_N_TILES = (512, 256, 128)
_K_TILES = (1024, 512, 256, 128)
_VMEM_LIMIT = 64 << 20  # raised scoped limit; actual use is ~11 MiB worst case


@functools.partial(jax.jit, static_argnums=(3, 4, 5))
def _linear_fwd(x, w_p, b_p, out_features, tn, tk):
    B, in_f = x.shape
    n_pad, k_pad = w_p.shape

    tm = _pick_tile(B, 8, _M_TILES)
    m_pad = _round_up(B, tm)

    m_blocks = m_pad // tm
    n_blocks = n_pad // tn
    k_blocks = k_pad // tk

    # v7x megacore heuristic: if the grid has no parallel split but N spans
    # real work at a smaller lane-dense tile, halve tn (never tm/tk) so the
    # two TensorCores can each take an N block.
    if m_blocks == 1 and n_blocks == 1 and tn > 128 and out_features > tn // 2:
        tn //= 2
        n_blocks = n_pad // tn

    # Only the activations are padded per call (weights/bias padded at init).
    x_p = x
    if m_pad != B or k_pad != in_f:
        x_p = jnp.pad(x, ((0, m_pad - B), (0, k_pad - in_f)))

    cost = pl.CostEstimate(
        flops=2 * m_pad * n_pad * k_pad,
        transcendentals=0,
        bytes_accessed=4 * (m_pad * k_pad + n_pad * k_pad + m_pad * n_pad + n_pad),
    )

    if k_blocks == 1:
        out_p = pl.pallas_call(
            _linear_kernel_single_k,
            out_shape=jax.ShapeDtypeStruct((m_pad, n_pad), x.dtype),
            grid=(m_blocks, n_blocks),
            in_specs=[
                pl.BlockSpec((tm, tk), lambda i, j: (i, 0)),
                pl.BlockSpec((tn, tk), lambda i, j: (j, 0)),
                pl.BlockSpec((1, tn), lambda i, j: (0, j)),
            ],
            out_specs=pl.BlockSpec((tm, tn), lambda i, j: (i, j)),
            compiler_params=pltpu.CompilerParams(
                dimension_semantics=("parallel", "parallel"),
                vmem_limit_bytes=_VMEM_LIMIT,
            ),
            cost_estimate=cost,
        )(x_p, w_p, b_p)
    else:
        out_p = pl.pallas_call(
            _linear_kernel_multi_k,
            out_shape=jax.ShapeDtypeStruct((m_pad, n_pad), x.dtype),
            grid=(m_blocks, n_blocks, k_blocks),
            in_specs=[
                pl.BlockSpec((tm, tk), lambda i, j, k: (i, k)),
                pl.BlockSpec((tn, tk), lambda i, j, k: (j, k)),
                pl.BlockSpec((1, tn), lambda i, j, k: (0, j)),
            ],
            out_specs=pl.BlockSpec((tm, tn), lambda i, j, k: (i, j)),
            scratch_shapes=[pltpu.VMEM((tm, tn), jnp.float32)],
            compiler_params=pltpu.CompilerParams(
                dimension_semantics=("parallel", "parallel", "arbitrary"),
                vmem_limit_bytes=_VMEM_LIMIT,
            ),
            cost_estimate=cost,
        )(x_p, w_p, b_p)

    if m_pad != B or n_pad != out_features:
        out_p = out_p[:B, :out_features]
    return out_p


class PallasLinear:
    """y = x @ W^T + b with W in PyTorch [out_features, in_features] layout.

    Weight/bias are padded exactly once here (module "init"); the per-call
    path only pads the activations.
    """

    def __init__(self, w, b):
        out_f, in_f = w.shape
        self.out_features = int(out_f)
        self.in_features = int(in_f)
        self.tn = _pick_tile(self.out_features, 128, _N_TILES)
        self.tk = _pick_tile(self.in_features, 128, _K_TILES)
        n_pad = _round_up(self.out_features, self.tn)
        k_pad = _round_up(self.in_features, self.tk)
        # Zero-pad once; padded K columns contribute 0 to the dot, padded N
        # rows are sliced off after the kernel.
        self.w_p = jnp.pad(w, ((0, n_pad - self.out_features),
                               (0, k_pad - self.in_features)))
        self.b_p = jnp.pad(b.reshape(1, self.out_features),
                           ((0, 0), (0, n_pad - self.out_features)))

    def __call__(self, x):
        return _linear_fwd(x, self.w_p, self.b_p,
                           self.out_features, self.tn, self.tk)


if __name__ == "__main__":
    key = jax.random.PRNGKey(0)
    kx, kw, kb = jax.random.split(key, 3)

    # Shapes consistent with nn.Linear(4, 4): features = 4, small batch.
    B, IN, OUT = 8, 4, 4
    x = jax.random.normal(kx, (B, IN), dtype=jnp.float32)

    # Deterministic init mimicking torch.nn.Linear default:
    # uniform(-1/sqrt(in_features), 1/sqrt(in_features))
    bound = 1.0 / jnp.sqrt(jnp.float32(IN))
    w = jax.random.uniform(kw, (OUT, IN), dtype=jnp.float32,
                           minval=-bound, maxval=bound)
    b = jax.random.uniform(kb, (OUT,), dtype=jnp.float32,
                           minval=-bound, maxval=bound)

    fc = PallasLinear(w, b)
    y = fc(x)
    jax.block_until_ready(y)

    # Reference check against plain JAX
    y_ref = x @ w.T + b
    assert y.shape == y_ref.shape, "shape mismatch vs reference"
    assert jnp.allclose(y, y_ref, atol=1e-5, rtol=1e-5), "mismatch vs reference"

    print("KERNEL_OK")
</pallas_src>

<mosaic_0001>
module attributes {stable_mosaic.version = 11 : i64} {
  func.func @_linear_kernel_single_k(%arg0: i32, %arg1: i32, %arg2: memref<8x128xf32, #tpu.memory_space<vmem>>, %arg3: memref<128x128xf32, #tpu.memory_space<vmem>>, %arg4: memref<1x128xf32, #tpu.memory_space<vmem>>, %arg5: memref<8x128xf32, #tpu.memory_space<vmem>>) attributes {dimension_semantics = [#tpu.dimension_semantics<parallel>, #tpu.dimension_semantics<parallel>], iteration_bounds = array<i64: 1, 1>, scalar_prefetch = 0 : i64, scratch_operands = 0 : i64, tpu.core_type = #tpu.core_type<tc>, window_params = [{transform_indices = @transform_0, window_bounds = array<i64: 8, 128>}, {transform_indices = @transform_1, window_bounds = array<i64: 128, 128>}, {transform_indices = @transform_2, window_bounds = array<i64: 1, 128>}, {transform_indices = @transform_3, window_bounds = array<i64: 8, 128>}]} {
    %c0 = arith.constant 0 : index
    %c0_0 = arith.constant 0 : index
    %0 = vector.load %arg2[%c0, %c0_0] : memref<8x128xf32, #tpu.memory_space<vmem>>, vector<8x128xf32>
    %c0_1 = arith.constant 0 : index
    %c0_2 = arith.constant 0 : index
    %1 = vector.load %arg3[%c0_1, %c0_2] : memref<128x128xf32, #tpu.memory_space<vmem>>, vector<128x128xf32>
    %cst = arith.constant dense<0.000000e+00> : vector<8x128xf32>
    %2 = tpu.matmul %0, %1, %cst {dimension_numbers = #tpu.dot_dimension_numbers<[1], [1], [0], [0], [0, 0, 1, 0], [], []>} : vector<8x128xf32>, vector<128x128xf32>, vector<8x128xf32> -> vector<8x128xf32>
    %c0_3 = arith.constant 0 : index
    %c0_4 = arith.constant 0 : index
    %3 = vector.load %arg4[%c0_3, %c0_4] : memref<1x128xf32, #tpu.memory_space<vmem>>, vector<1x128xf32>
    %4 = vector.broadcast %3 : vector<1x128xf32> to vector<8x128xf32>
    %5 = arith.addf %2, %4 : vector<8x128xf32>
    %c0_5 = arith.constant 0 : index
    %c0_6 = arith.constant 0 : index
    %6 = vector.load %arg5[%c0_5, %c0_6] : memref<8x128xf32, #tpu.memory_space<vmem>>, vector<8x128xf32>
    tpu.vector_store %arg5[%c0_5, %c0_6], %5 {strides = array<i32>} : memref<8x128xf32, #tpu.memory_space<vmem>>, vector<8x128xf32>,
    return
  }
  func.func @transform_0(%arg0: i32, %arg1: i32) -> (i32, i32) {
    %c0_i32 = arith.constant 0 : i32
    %c0_i32_0 = arith.constant 0 : i32
    return %arg0, %c0_i32 : i32, i32
  }
  func.func @transform_1(%arg0: i32, %arg1: i32) -> (i32, i32) {
    %c0_i32 = arith.constant 0 : i32
    %c0_i32_0 = arith.constant 0 : i32
    return %arg1, %c0_i32 : i32, i32
  }
  func.func @transform_2(%arg0: i32, %arg1: i32) -> (i32, i32) {
    %c0_i32 = arith.constant 0 : i32
    %c0_i32_0 = arith.constant 0 : i32
    return %c0_i32, %arg1 : i32, i32
  }
  func.func @transform_3(%arg0: i32, %arg1: i32) -> (i32, i32) {
    %c0_i32 = arith.constant 0 : i32
    return %arg0, %arg1 : i32, i32
  }
}

</mosaic_0001>

<llo_original>
// kernel: _linear_fwd.1
$region0: #{_linear_fwd.1}
  #allocation0 [shape = 'u32[]', space=smem, size = 0x4, offset = 0x4, fixed_abs, tag = 'smem constant byte address 0x4 - core index']
  #allocation1 [shape = 'u32[144,128]{1,0:T(1,128)}', space=vmem, size = 0x12000, scoped, tag = 'internal scratch']
  %s0 = inlined_call_operand.hbm [shape: f32[8,128], index: 0, kind: input, shape index: {}]
  %s1 = inlined_call_operand.hbm [shape: f32[128,128], index: 1, kind: input, shape index: {}]
  %s2 = inlined_call_operand.hbm [shape: f32[1,128], index: 2, kind: input, shape index: {}]
  %s3 = inlined_call_operand.hbm [shape: f32[8,128], index: 3, kind: output, shape index: {}]
  %s4 = sld [smem:[#allocation0]]
  $region34: #{_linear_fwd.1} parent=0
    _
  %s6 = ssub.s32 1, %s4
  %s7 = scalar_select 0, %s6, %s4
  $region1: #{_linear_fwd.1} parent=0
    #allocation2 [shape = 'u8[4096]{0}', space=vmem, size = 0x1000, scoped, tag = 'input window, operand 0, single buffered']
    #allocation3 [shape = 's32[1]{0}', space=sflag, size = 0x4, scoped, tag = 'scoped memory for _linear_fwd.1']
    #allocation4 [shape = 's32[1]{0}', space=sflag, size = 0x4, scoped, tag = 'scoped memory for _linear_fwd.1']
    #allocation5 [shape = 'u8[65536]{0}', space=vmem, size = 0x10000, scoped, tag = 'input window, operand 1, single buffered']
    #allocation6 [shape = 's32[1]{0}', space=sflag, size = 0x4, scoped, tag = 'scoped memory for _linear_fwd.1']
    #allocation7 [shape = 'u8[512]{0}', space=vmem, size = 0x400, scoped, tag = 'input window, operand 2, single buffered']
    #allocation8 [shape = 'u8[4096]{0}', space=vmem, size = 0x1000, scoped, tag = 'output window, operand 0, single buffered']
    %8 = vsyncpa [#allocation3], 0
    %9 = vsyncpa [#allocation6], 0
    %10 = vsyncpa [#allocation4], 0
    // Predicated region
    $region2: #{_linear_fwd.1} parent=1 // pred_check
      _
    $region3: #{_linear_fwd.1} parent=1 // pred_check_branch
      %12 = sbr.rel (0) target = $region5
    $region4: #{_linear_fwd.1} parent=1 // pred_region
      %s14 = ssub.s32 128, 128
      %15 = vsyncadd [#allocation3], %s14
      %s17 = sshll.u32 [#allocation2], 4
      %s18 = int_to_ptr.vmem [resolvable:$true] %s17
      %20 = dma.hbm_to_vmem [thread:$0]  %s0, 128, %s18, [#allocation3]
    $region5: #{_linear_fwd.1} parent=1 // pred_fallthru
      _
    // Predicated region
    $region6: #{_linear_fwd.1} parent=1 // pred_check
      _
    $region7: #{_linear_fwd.1} parent=1 // pred_check_branch
      %22 = sbr.rel (0) target = $region9
    $region8: #{_linear_fwd.1} parent=1 // pred_region
      %s24 = ssub.s32 2048, 2048
      %25 = vsyncadd [#allocation6], %s24
      %s26 = sshll.u32 [#allocation5], 4
      %s27 = int_to_ptr.vmem [resolvable:$true] %s26
      %32 = dma.hbm_to_vmem [thread:$0]  %s1, 2048, %s27, [#allocation6], 128, 128, 8
    $region9: #{_linear_fwd.1} parent=1 // pred_fallthru
      _
    // Predicated region
    $region10: #{_linear_fwd.1} parent=1 // pred_check
      _
    $region11: #{_linear_fwd.1} parent=1 // pred_check_branch
      %34 = sbr.rel (0) target = $region13
    $region12: #{_linear_fwd.1} parent=1 // pred_region
      %s36 = ssub.s32 16, 16
      %37 = vsyncadd [#allocation6], %s36
      %s39 = sshll.u32 [#allocation7], 4
      %s40 = int_to_ptr.vmem [resolvable:$true] %s39
      %42 = dma.hbm_to_vmem [thread:$0]  %s2, 16, %s40, [#allocation6]
    $region13: #{_linear_fwd.1} parent=1 // pred_fallthru
      _
    // Predicated region
    $region14: #{_linear_fwd.1} parent=1 // pred_check
      _
    $region15: #{_linear_fwd.1} parent=1 // pred_check_branch
      %44 = sbr.rel (0) target = $region17
    $region16: #{_linear_fwd.1} parent=1 // pred_region
      %45 = dma.done [#allocation3], 128
    $region17: #{_linear_fwd.1} parent=1 // pred_fallthru
      _
    // Predicated region
    $region18: #{_linear_fwd.1} parent=1 // pred_check
      _
    $region19: #{_linear_fwd.1} parent=1 // pred_check_branch
      %47 = sbr.rel (0) target = $region21
    $region20: #{_linear_fwd.1} parent=1 // pred_region
      %48 = dma.done [#allocation6], 2048
    $region21: #{_linear_fwd.1} parent=1 // pred_fallthru
      _
    // Predicated region
    $region22: #{_linear_fwd.1} parent=1 // pred_check
      _
    $region23: #{_linear_fwd.1} parent=1 // pred_check_branch
      %50 = sbr.rel (0) target = $region25
    $region24: #{_linear_fwd.1} parent=1 // pred_region
      %51 = dma.done [#allocation6], 16
    $region25: #{_linear_fwd.1} parent=1 // pred_fallthru
      _
    %v52 = vld [vmem:[#allocation2] sm:$0xff]
    %v53 = vld [vmem:[#allocation5] sm:$0xff]
    %v54 = vld [vmem:[#allocation5 + $0x8] sm:$0xff]
    %v55 = vld [vmem:[#allocation5 + $0x10] sm:$0xff]
    %v56 = vld [vmem:[#allocation5 + $0x18] sm:$0xff]
    %v57 = vld [vmem:[#allocation5 + $0x20] sm:$0xff]
    %v58 = vld [vmem:[#allocation5 + $0x28] sm:$0xff]
    %v59 = vld [vmem:[#allocation5 + $0x30] sm:$0xff]
    %v60 = vld [vmem:[#allocation5 + $0x38] sm:$0xff]
    %v61 = vld [vmem:[#allocation5 + $0x40] sm:$0xff]
    %v62 = vld [vmem:[#allocation5 + $0x48] sm:$0xff]
    %v63 = vld [vmem:[#allocation5 + $0x50] sm:$0xff]
    %v64 = vld [vmem:[#allocation5 + $0x58] sm:$0xff]
    %v65 = vld [vmem:[#allocation5 + $0x60] sm:$0xff]
    %v66 = vld [vmem:[#allocation5 + $0x68] sm:$0xff]
    %v67 = vld [vmem:[#allocation5 + $0x70] sm:$0xff]
    %v68 = vld [vmem:[#allocation5 + $0x78] sm:$0xff]
    %v69 = vld [vmem:[#allocation7] sm:$0x1]
    %v71 = vlaneseq
    %v72 = vshrl.u32 %v71, 7
    %v73 = vsub.s32 0, %v72
    %v74 = vrot.slane %v69, %v73
    %76 = vmatprep.subr.mxu0 0.0
    %77 = vmatpush1.xpose.msra.mxu0 %v53
    %78 = vmatprep.subr.mxu0 0.0
    %79 = vmatpush1.xpose.msra.mxu0 %v54
    %80 = vmatprep.subr.mxu0 0.0
    %81 = vmatpush1.xpose.msra.mxu0 %v55
    %82 = vmatprep.subr.mxu0 0.0
    %83 = vmatpush1.xpose.msra.mxu0 %v56
    %84 = vmatprep.subr.mxu0 0.0
    %85 = vmatpush1.xpose.msra.mxu0 %v57
    %86 = vmatprep.subr.mxu0 0.0
    %87 = vmatpush1.xpose.msra.mxu0 %v58
    %88 = vmatprep.subr.mxu0 0.0
    %89 = vmatpush1.xpose.msra.mxu0 %v59
    %90 = vmatprep.subr.mxu0 0.0
    %91 = vmatpush1.xpose.msra.mxu0 %v60
    %92 = vmatprep.subr.mxu0 0.0
    %93 = vmatpush1.xpose.msra.mxu0 %v61
    %94 = vmatprep.subr.mxu0 0.0
    %95 = vmatpush1.xpose.msra.mxu0 %v62
    %96 = vmatprep.subr.mxu0 0.0
    %97 = vmatpush1.xpose.msra.mxu0 %v63
    %98 = vmatprep.subr.mxu0 0.0
    %99 = vmatpush1.xpose.msra.mxu0 %v64
    %100 = vmatprep.subr.mxu0 0.0
    %101 = vmatpush1.xpose.msra.mxu0 %v65
    %102 = vmatprep.subr.mxu0 0.0
    %103 = vmatpush1.xpose.msra.mxu0 %v66
    %104 = vmatprep.subr.mxu0 0.0
    %105 = vmatpush1.xpose.msra.mxu0 %v67
    %106 = vmatprep.subr.mxu0 0.0
    %107 = vmatpush1.xpose.msra.mxu0 %v68
    %108 = vmatprep.subr.mxu0 0.0
    %109 = vmatpush1.xpose.msra.mxu0 0.0
    %110 = vmatprep.subr.mxu0 0.0
    %111 = vmatpush1.xpose.msra.mxu0 0.0
    %112 = vmatprep.subr.mxu0 0.0
    %113 = vmatpush1.xpose.msra.mxu0 0.0
    %114 = vmatprep.subr.mxu0 0.0
    %115 = vmatpush1.xpose.msra.mxu0 0.0
    %116 = vmatprep.subr.mxu0 0.0
    %117 = vmatpush1.xpose.msra.mxu0 0.0
    %118 = vmatprep.subr.mxu0 0.0
    %119 = vmatpush1.xpose.msra.mxu0 0.0
    %120 = vmatprep.subr.mxu0 0.0
    %121 = vmatpush1.xpose.msra.mxu0 0.0
    %122 = vmatprep.subr.mxu0 0.0
    %123 = vmatpush1.xpose.msra.mxu0 0.0
    %124 = vmatprep.subr.mxu0 0.0
    %125 = vmatpush1.xpose.msra.mxu0 0.0
    %126 = vmatprep.subr.mxu0 0.0
    %127 = vmatpush1.xpose.msra.mxu0 0.0
    %128 = vmatprep.subr.mxu0 0.0
    %129 = vmatpush1.xpose.msra.mxu0 0.0
    %130 = vmatprep.subr.mxu0 0.0
    %131 = vmatpush1.xpose.msra.mxu0 0.0
    %132 = vmatprep.subr.mxu0 0.0
    %133 = vmatpush1.xpose.msra.mxu0 0.0
    %134 = vmatprep.subr.mxu0 0.0
    %135 = vmatpush1.xpose.msra.mxu0 0.0
    %136 = vmatprep.subr.mxu0 0.0
    %137 = vmatpush1.xpose.msra.mxu0 0.0
    %138 = vmatprep.subr.mxu0 0.0
    %139 = vmatpush1.xpose.msra.mxu0 0.0
    %140 = vmatprep.mubr.f32.mxu0 0.0
    %141 = vmatmul.mubr.f32.gmra.mrb[0].mxu0 %v52
    %v142 = vpop.f32.mrb[0].mxu0
    %v143 = vadd.f32 %v74, %v142
    %v144 = vpop.f32.mrb[0].mxu0
    %145 = vdwg.mxu0
    %146 = vst [vmem:[#allocation8] sm:$0xff] %v143
    // Predicated region
    $region26: #{_linear_fwd.1} parent=1 // pred_check
      _
    $region27: #{_linear_fwd.1} parent=1 // pred_check_branch
      %148 = sbr.rel (0) target = $region29
    $region28: #{_linear_fwd.1} parent=1 // pred_region
      %s150 = ssub.s32 128, 128
      %151 = vsyncadd [#allocation4], %s150
      %s153 = sshll.u32 [#allocation8], 4
      %s154 = int_to_ptr.vmem [resolvable:$true] %s153
      %156 = dma.vmem_to_hbm [thread:$0]  %s154, 128, %s3, [#allocation4]
    $region29: #{_linear_fwd.1} parent=1 // pred_fallthru
      _
    // Predicated region
    $region30: #{_linear_fwd.1} parent=1 // pred_check
      _
    $region31: #{_linear_fwd.1} parent=1 // pred_check_branch
      %158 = sbr.rel (0) target = $region33
    $region32: #{_linear_fwd.1} parent=1 // pred_region
      %159 = dma.done [#allocation4], 128
    $region33: #{_linear_fwd.1} parent=1 // pred_fallthru
      _
    %160 = vsyncpa [#allocation3], 1
    %161 = vsyncpa [#allocation6], 1
    %162 = vsyncpa [#allocation4], 1

</llo_original>
